<compile_context>
chip_gen: v6e
topology: v6e:2x2x1
jax: 0.10.0
libtpu: 0.0.40
codegen_flags: <defaults>
</compile_context>

<pallas_src>
import jax
import jax.numpy as jnp
from jax.experimental import pallas as pl
from jax.experimental.pallas import tpu as pltpu

LANE = 128          # TPU lane width
SUBLANE_BF16 = 16   # bf16 sublane packing


def _round_up(n, m):
    return ((n + m - 1) // m) * m


def _chip_generation():
    """Best-effort TPU generation sniff (5 / 6 / 7); 0 if unknown."""
    try:
        kind = jax.devices()[0].device_kind.lower()
    except Exception:
        return 0
    for gen in (7, 6, 5):
        if f"v{gen}" in kind:
            return gen
    return 0


def _pick_batch_tile(B):
    """Choose the batch tile TB.

    Small B: pad only to the bf16 sublane pack (16), not a full 128-row MXU
    tile (avoids 16x redundant MXU/EUP work and a 64 KB padded writeback at
    B=8). Large B: 256 on v6e/v7x (256-wide MXU M axis; B>=512 keeps a
    >=2-step parallel grid so v7x's second TensorCore is used), 128 on v5e.
    """
    if B <= 128:
        return _round_up(max(B, 1), SUBLANE_BF16)
    gen = _chip_generation()
    if gen >= 6 and B >= 512:
        return 256
    return 128


def actor_kernel(x_ref, w1_ref, b1_ref, w2_ref, b2_ref, w3_ref, b3_ref, o_ref):
    # x_ref: [TB, S] bf16 batch tile; w* bf16; b* f32; o_ref: [TB, A_pad].
    x = x_ref[...]

    # Hoisted bias reads (read each ref exactly once).
    b1 = b1_ref[...]
    b2 = b2_ref[...]
    b3 = b3_ref[...]

    # fc1 + (dropout == identity in eval) + relu.
    # bf16 downcast is fused into the epilogue so the intermediate that lives
    # between matmuls is bf16, not a 4x-larger f32 tile that spills to VMEM.
    h1 = jnp.maximum(
        jnp.dot(x, w1_ref[...], preferred_element_type=jnp.float32) + b1, 0.0
    ).astype(jnp.bfloat16)

    # fc2 + relu
    h2 = jnp.maximum(
        jnp.dot(h1, w2_ref[...], preferred_element_type=jnp.float32) + b2, 0.0
    ).astype(jnp.bfloat16)

    # fc_out + tanh, written lane-dense into the 128-padded output block.
    out = jnp.dot(h2, w3_ref[...], preferred_element_type=jnp.float32) + b3
    o_ref[...] = jnp.tanh(out).astype(o_ref.dtype)


def prepare_actor_params(params):
    """One-time parameter prep (do NOT call per forward step).

    Casts weights to bf16 and zero-pads fc_out's output dim to a lane-dense
    multiple of 128 so the forward path carries zero per-call cast/pad ops.

    params: dict with w1 [S,F1], b1 [1,F1], w2 [F1,F2], b2 [1,F2],
            w3 [F2,A], b3 [1,A]   (W stored [in, out] so kernel does x @ W + b)
    Returns (prepped_params, action_size).
    """
    A = params["w3"].shape[1]
    a_pad = _round_up(A, LANE)
    pad_a = ((0, 0), (0, a_pad - A))
    prepped = {
        "w1": params["w1"].astype(jnp.bfloat16),
        "b1": params["b1"].astype(jnp.float32),
        "w2": params["w2"].astype(jnp.bfloat16),
        "b2": params["b2"].astype(jnp.float32),
        "w3": jnp.pad(params["w3"], pad_a).astype(jnp.bfloat16),
        "b3": jnp.pad(params["b3"], pad_a).astype(jnp.float32),
    }
    return prepped, A


def actor_forward(state, prepped, action_size, *, tb=None, out_dtype=jnp.float32):
    """Fused actor MLP forward: fc1 -> relu -> fc2 -> relu -> fc_out -> tanh.

    state:       [B, state_size] float32
    prepped:     output of prepare_actor_params (bf16 weights, padded fc_out)
    action_size: true (unpadded) action dimension
    tb:          batch tile; None = auto via _pick_batch_tile.
    out_dtype:   jnp.float32 (default, matches PyTorch) or jnp.bfloat16 to
                 halve the output writeback if the consumer tolerates it.
    """
    B, S = state.shape
    a_pad = prepped["w3"].shape[1]

    if tb is None:
        tb = _pick_batch_tile(B)
    b_pad = _round_up(B, tb)

    # Only the activation is padded / cast per call.
    x = state
    if b_pad != B:
        x = jnp.pad(x, ((0, b_pad - B), (0, 0)))
    x = x.astype(jnp.bfloat16)

    # Weights/biases: constant block index -> VMEM-resident across grid steps;
    # single-buffered (no useless second pipeline buffer for ~360 KB of weights).
    def resident(arr):
        return pl.BlockSpec(arr.shape, lambda i: (0, 0),
                            pipeline_mode=pl.Buffered(1))

    out = pl.pallas_call(
        actor_kernel,
        out_shape=jax.ShapeDtypeStruct((b_pad, a_pad), out_dtype),
        grid=(b_pad // tb,),
        in_specs=[
            pl.BlockSpec((tb, S), lambda i: (i, 0)),          # batch tile
            resident(prepped["w1"]), resident(prepped["b1"]),
            resident(prepped["w2"]), resident(prepped["b2"]),
            resident(prepped["w3"]), resident(prepped["b3"]),
        ],
        out_specs=pl.BlockSpec((tb, a_pad), lambda i: (i, 0)),
        compiler_params=pltpu.CompilerParams(
            dimension_semantics=("parallel",),
        ),
    )(x, prepped["w1"], prepped["b1"], prepped["w2"], prepped["b2"],
      prepped["w3"], prepped["b3"])

    return out[:B, :action_size]


def orthogonal_linear_params(key, in_features, out_features, w_scale=1.0):
    """Deterministic stand-in for layer_init: orthogonal weight, zero bias.

    Returns W as [in_features, out_features] (already transposed for x @ W).
    """
    w_torch_layout = jax.nn.initializers.orthogonal(scale=w_scale)(
        key, (out_features, in_features), jnp.float32)
    w = jnp.transpose(w_torch_layout)              # [in, out]
    b = jnp.zeros((1, out_features), jnp.float32)  # [1, out]
    return w, b


def make_actor_params(key, state_size, action_size, fc1_units=512, fc2_units=256):
    k1, k2, k3 = jax.random.split(key, 3)
    w1, b1 = orthogonal_linear_params(k1, state_size, fc1_units)
    w2, b2 = orthogonal_linear_params(k2, fc1_units, fc2_units)
    w3, b3 = orthogonal_linear_params(k3, fc2_units, action_size)
    return {"w1": w1, "b1": b1, "w2": w2, "b2": b2, "w3": w3, "b3": b3}


if __name__ == "__main__":
    key = jax.random.PRNGKey(0)
    k_param, k_state = jax.random.split(key)

    batch = 8
    state_size = 32
    action_size = 4
    fc1_units = 512
    fc2_units = 256

    params = make_actor_params(k_param, state_size, action_size,
                               fc1_units=fc1_units, fc2_units=fc2_units)
    # One-time prep (bf16 cast + lane padding) -- kept out of the forward path.
    prepped, act_size = prepare_actor_params(params)

    state = jax.random.normal(k_state, (batch, state_size), jnp.float32)

    out = actor_forward(state, prepped, act_size)
    out = jax.block_until_ready(out)

    # Shape / range sanity (tanh output).
    assert out.shape == (batch, action_size)
    assert bool(jnp.all(jnp.abs(out) <= 1.0))

    # Reference 1: same bf16-MXU / f32-accumulate math in plain JAX (tight check).
    w1b = params["w1"].astype(jnp.bfloat16)
    w2b = params["w2"].astype(jnp.bfloat16)
    w3b = params["w3"].astype(jnp.bfloat16)
    h1 = jnp.maximum(jnp.dot(state.astype(jnp.bfloat16), w1b,
                             preferred_element_type=jnp.float32) + params["b1"], 0.0)
    h2 = jnp.maximum(jnp.dot(h1.astype(jnp.bfloat16), w2b,
                             preferred_element_type=jnp.float32) + params["b2"], 0.0)
    ref_bf16 = jnp.tanh(jnp.dot(h2.astype(jnp.bfloat16), w3b,
                                preferred_element_type=jnp.float32) + params["b3"])
    assert bool(jnp.allclose(out, ref_bf16, atol=1e-3, rtol=1e-3))

    # Reference 2: full-f32 math (loose check -- bf16 weight/activation quantization).
    r = jnp.maximum(state @ params["w1"] + params["b1"], 0.0)
    r = jnp.maximum(r @ params["w2"] + params["b2"], 0.0)
    ref_f32 = jnp.tanh(r @ params["w3"] + params["b3"])
    assert bool(jnp.allclose(out, ref_f32, atol=3e-2, rtol=3e-2))

    print("KERNEL_OK")
</pallas_src>

<mosaic_0001>
module attributes {stable_mosaic.version = 11 : i64} {
  func.func @actor_kernel(%arg0: i32, %arg1: memref<16x32xbf16, #tpu.memory_space<vmem>>, %arg2: memref<32x512xbf16, #tpu.memory_space<vmem>>, %arg3: memref<1x512xf32, #tpu.memory_space<vmem>>, %arg4: memref<512x256xbf16, #tpu.memory_space<vmem>>, %arg5: memref<1x256xf32, #tpu.memory_space<vmem>>, %arg6: memref<256x128xbf16, #tpu.memory_space<vmem>>, %arg7: memref<1x128xf32, #tpu.memory_space<vmem>>, %arg8: memref<16x128xf32, #tpu.memory_space<vmem>>) attributes {dimension_semantics = [#tpu.dimension_semantics<parallel>], iteration_bounds = array<i64: 1>, scalar_prefetch = 0 : i64, scratch_operands = 0 : i64, tpu.core_type = #tpu.core_type<tc>, window_params = [{transform_indices = @transform_0, window_bounds = array<i64: 16, 32>}, {pipeline_mode = #tpu.pipeline_mode<synchronous>, transform_indices = @transform_1, window_bounds = array<i64: 32, 512>}, {pipeline_mode = #tpu.pipeline_mode<synchronous>, transform_indices = @transform_2, window_bounds = array<i64: 1, 512>}, {pipeline_mode = #tpu.pipeline_mode<synchronous>, transform_indices = @transform_3, window_bounds = array<i64: 512, 256>}, {pipeline_mode = #tpu.pipeline_mode<synchronous>, transform_indices = @transform_4, window_bounds = array<i64: 1, 256>}, {pipeline_mode = #tpu.pipeline_mode<synchronous>, transform_indices = @transform_5, window_bounds = array<i64: 256, 128>}, {pipeline_mode = #tpu.pipeline_mode<synchronous>, transform_indices = @transform_6, window_bounds = array<i64: 1, 128>}, {transform_indices = @transform_7, window_bounds = array<i64: 16, 128>}]} {
    %c0 = arith.constant 0 : index
    %c0_0 = arith.constant 0 : index
    %0 = vector.load %arg1[%c0, %c0_0] : memref<16x32xbf16, #tpu.memory_space<vmem>>, vector<16x32xbf16>
    %c0_1 = arith.constant 0 : index
    %c0_2 = arith.constant 0 : index
    %1 = vector.load %arg3[%c0_1, %c0_2] : memref<1x512xf32, #tpu.memory_space<vmem>>, vector<1x512xf32>
    %c0_3 = arith.constant 0 : index
    %c0_4 = arith.constant 0 : index
    %2 = vector.load %arg5[%c0_3, %c0_4] : memref<1x256xf32, #tpu.memory_space<vmem>>, vector<1x256xf32>
    %c0_5 = arith.constant 0 : index
    %c0_6 = arith.constant 0 : index
    %3 = vector.load %arg7[%c0_5, %c0_6] : memref<1x128xf32, #tpu.memory_space<vmem>>, vector<1x128xf32>
    %c0_7 = arith.constant 0 : index
    %c0_8 = arith.constant 0 : index
    %4 = vector.load %arg2[%c0_7, %c0_8] : memref<32x512xbf16, #tpu.memory_space<vmem>>, vector<32x512xbf16>
    %cst = arith.constant dense<0.000000e+00> : vector<16x512xf32>
    %5 = tpu.matmul %0, %4, %cst {dimension_numbers = #tpu.dot_dimension_numbers<[1], [0], [0], [1], [0, 0, 1, 1], [], []>} : vector<16x32xbf16>, vector<32x512xbf16>, vector<16x512xf32> -> vector<16x512xf32>
    %6 = vector.broadcast %1 : vector<1x512xf32> to vector<16x512xf32>
    %7 = arith.addf %5, %6 : vector<16x512xf32>
    %cst_9 = arith.constant 0.000000e+00 : f32
    %8 = vector.broadcast %cst_9 : f32 to vector<16x512xf32>
    %9 = arith.maximumf %7, %8 : vector<16x512xf32>
    %10 = arith.truncf %9 : vector<16x512xf32> to vector<16x512xbf16>
    %c0_10 = arith.constant 0 : index
    %c0_11 = arith.constant 0 : index
    %11 = vector.load %arg4[%c0_10, %c0_11] : memref<512x256xbf16, #tpu.memory_space<vmem>>, vector<512x256xbf16>
    %cst_12 = arith.constant dense<0.000000e+00> : vector<16x256xf32>
    %12 = tpu.matmul %10, %11, %cst_12 {dimension_numbers = #tpu.dot_dimension_numbers<[1], [0], [0], [1], [0, 0, 1, 1], [], []>} : vector<16x512xbf16>, vector<512x256xbf16>, vector<16x256xf32> -> vector<16x256xf32>
    %13 = vector.broadcast %2 : vector<1x256xf32> to vector<16x256xf32>
    %14 = arith.addf %12, %13 : vector<16x256xf32>
    %cst_13 = arith.constant 0.000000e+00 : f32
    %15 = vector.broadcast %cst_13 : f32 to vector<16x256xf32>
    %16 = arith.maximumf %14, %15 : vector<16x256xf32>
    %17 = arith.truncf %16 : vector<16x256xf32> to vector<16x256xbf16>
    %c0_14 = arith.constant 0 : index
    %c0_15 = arith.constant 0 : index
    %18 = vector.load %arg6[%c0_14, %c0_15] : memref<256x128xbf16, #tpu.memory_space<vmem>>, vector<256x128xbf16>
    %cst_16 = arith.constant dense<0.000000e+00> : vector<16x128xf32>
    %19 = tpu.matmul %17, %18, %cst_16 {dimension_numbers = #tpu.dot_dimension_numbers<[1], [0], [0], [1], [0, 0, 1, 1], [], []>} : vector<16x256xbf16>, vector<256x128xbf16>, vector<16x128xf32> -> vector<16x128xf32>
    %20 = vector.broadcast %3 : vector<1x128xf32> to vector<16x128xf32>
    %21 = arith.addf %19, %20 : vector<16x128xf32>
    %22 = math.tanh %21 : vector<16x128xf32>
    %c0_17 = arith.constant 0 : index
    %c0_18 = arith.constant 0 : index
    %23 = vector.load %arg8[%c0_17, %c0_18] : memref<16x128xf32, #tpu.memory_space<vmem>>, vector<16x128xf32>
    tpu.vector_store %arg8[%c0_17, %c0_18], %22 {strides = array<i32>} : memref<16x128xf32, #tpu.memory_space<vmem>>, vector<16x128xf32>,
    return
  }
  func.func @transform_0(%arg0: i32) -> (i32, i32) {
    %c0_i32 = arith.constant 0 : i32
    %c0_i32_0 = arith.constant 0 : i32
    return %arg0, %c0_i32 : i32, i32
  }
  func.func @transform_1(%arg0: i32) -> (i32, i32) {
    %c0_i32 = arith.constant 0 : i32
    %c0_i32_0 = arith.constant 0 : i32
    %c0_i32_1 = arith.constant 0 : i32
    return %c0_i32, %c0_i32_0 : i32, i32
  }
  func.func @transform_2(%arg0: i32) -> (i32, i32) {
    %c0_i32 = arith.constant 0 : i32
    %c0_i32_0 = arith.constant 0 : i32
    %c0_i32_1 = arith.constant 0 : i32
    return %c0_i32, %c0_i32_0 : i32, i32
  }
  func.func @transform_3(%arg0: i32) -> (i32, i32) {
    %c0_i32 = arith.constant 0 : i32
    %c0_i32_0 = arith.constant 0 : i32
    %c0_i32_1 = arith.constant 0 : i32
    return %c0_i32, %c0_i32_0 : i32, i32
  }
  func.func @transform_4(%arg0: i32) -> (i32, i32) {
    %c0_i32 = arith.constant 0 : i32
    %c0_i32_0 = arith.constant 0 : i32
    %c0_i32_1 = arith.constant 0 : i32
    return %c0_i32, %c0_i32_0 : i32, i32
  }
  func.func @transform_5(%arg0: i32) -> (i32, i32) {
    %c0_i32 = arith.constant 0 : i32
    %c0_i32_0 = arith.constant 0 : i32
    %c0_i32_1 = arith.constant 0 : i32
    return %c0_i32, %c0_i32_0 : i32, i32
  }
  func.func @transform_6(%arg0: i32) -> (i32, i32) {
    %c0_i32 = arith.constant 0 : i32
    %c0_i32_0 = arith.constant 0 : i32
    %c0_i32_1 = arith.constant 0 : i32
    return %c0_i32, %c0_i32_0 : i32, i32
  }
  func.func @transform_7(%arg0: i32) -> (i32, i32) {
    %c0_i32 = arith.constant 0 : i32
    %c0_i32_0 = arith.constant 0 : i32
    return %arg0, %c0_i32 : i32, i32
  }
}

</mosaic_0001>

<llo_original>
// kernel: tpu_custom_call.1
$region0: #{tpu_custom_call.1}
  #allocation0 [shape = 'u32[]', space=smem, size = 0x4, offset = 0x4, fixed_abs, tag = 'smem constant byte address 0x4 - core index']
  #allocation1 [shape = 'u32[144,128]{1,0:T(1,128)}', space=vmem, size = 0x12000, scoped, tag = 'internal scratch']
  %s0 = inlined_call_operand.hbm [shape: bf16[16,32], index: 0, kind: input, shape index: {}]
  %s1 = inlined_call_operand.hbm [shape: bf16[32,512], index: 1, kind: input, shape index: {}]
  %s2 = inlined_call_operand.hbm [shape: f32[1,512], index: 2, kind: input, shape index: {}]
  %s3 = inlined_call_operand.hbm [shape: bf16[512,256], index: 3, kind: input, shape index: {}]
  %s4 = inlined_call_operand.vmem [shape: f32[1,256], index: 4, kind: input, shape index: {}]
  %s5 = inlined_call_operand.hbm [shape: bf16[256,128], index: 5, kind: input, shape index: {}]
  %s6 = inlined_call_operand.vmem [shape: f32[1,128], index: 6, kind: input, shape index: {}]
  %s7 = inlined_call_operand.hbm [shape: f32[16,128], index: 7, kind: output, shape index: {}]
  %s8 = sld [smem:[#allocation0]]
  $region58: #{tpu_custom_call.1} parent=0
    _
  %s10 = ssub.s32 1, %s8
  %s11 = scalar_select 0, %s10, %s8
  $region1: #{tpu_custom_call.1} parent=0
    #allocation2 [shape = 'u8[4096]{0}', space=vmem, size = 0x1000, scoped, tag = 'input window, operand 0, single buffered']
    #allocation3 [shape = 's32[1]{0}', space=sflag, size = 0x4, scoped, tag = 'scoped memory for tpu_custom_call.1']
    #allocation4 [shape = 's32[1]{0}', space=sflag, size = 0x4, scoped, tag = 'scoped memory for tpu_custom_call.1']
    #allocation5 [shape = 'u8[32768]{0}', space=vmem, size = 0x8000, scoped, tag = 'input window, operand 1, single buffered']
    #allocation6 [shape = 's32[1]{0}', space=sflag, size = 0x4, scoped, tag = 'scoped memory for tpu_custom_call.1']
    #allocation7 [shape = 'u8[2048]{0}', space=vmem, size = 0x800, scoped, tag = 'input window, operand 2, single buffered']
    #allocation8 [shape = 'u8[262144]{0}', space=vmem, size = 0x40000, scoped, tag = 'input window, operand 3, single buffered']
    #allocation9 [shape = 's32[1]{0}', space=sflag, size = 0x4, scoped, tag = 'scoped memory for tpu_custom_call.1']
    #allocation10 [shape = 'u8[65536]{0}', space=vmem, size = 0x10000, scoped, tag = 'input window, operand 5, single buffered']
    #allocation11 [shape = 'u8[8192]{0}', space=vmem, size = 0x2000, scoped, tag = 'output window, operand 0, single buffered']
    %12 = vsyncpa [#allocation3], 0
    %13 = vsyncpa [#allocation6], 0
    %14 = vsyncpa [#allocation9], 0
    %15 = vsyncpa [#allocation4], 0
    // Predicated region
    $region2: #{tpu_custom_call.1} parent=1 // pred_check
      _
    $region3: #{tpu_custom_call.1} parent=1 // pred_check_branch
      %17 = sbr.rel (0) target = $region5
    $region4: #{tpu_custom_call.1} parent=1 // pred_region
      %s19 = ssub.s32 128, 128
      %20 = vsyncadd [#allocation3], %s19
      %s21 = sshll.u32 [#allocation2], 4
      %s22 = int_to_ptr.vmem [resolvable:$true] %s21
      %27 = dma.hbm_to_vmem [thread:$0]  %s0, 128, %s22, [#allocation3], 64, 64, 4
    $region5: #{tpu_custom_call.1} parent=1 // pred_fallthru
      _
    // Predicated region
    $region6: #{tpu_custom_call.1} parent=1 // pred_check
      _
    $region7: #{tpu_custom_call.1} parent=1 // pred_check_branch
      %29 = sbr.rel (0) target = $region9
    $region8: #{tpu_custom_call.1} parent=1 // pred_region
      %s31 = ssub.s32 1024, 1024
      %32 = vsyncadd [#allocation6], %s31
      %s33 = sshll.u32 [#allocation5], 4
      %s34 = int_to_ptr.vmem [resolvable:$true] %s33
      %39 = dma.hbm_to_vmem [thread:$0]  %s1, 1024, %s34, [#allocation6], 256, 256, 16
    $region9: #{tpu_custom_call.1} parent=1 // pred_fallthru
      _
    // Predicated region
    $region10: #{tpu_custom_call.1} parent=1 // pred_check
      _
    $region11: #{tpu_custom_call.1} parent=1 // pred_check_branch
      %41 = sbr.rel (0) target = $region13
    $region12: #{tpu_custom_call.1} parent=1 // pred_region
      %s43 = ssub.s32 64, 64
      %44 = vsyncadd [#allocation6], %s43
      %s46 = sshll.u32 [#allocation7], 4
      %s47 = int_to_ptr.vmem [resolvable:$true] %s46
      %49 = dma.hbm_to_vmem [thread:$0]  %s2, 64, %s47, [#allocation6]
    $region13: #{tpu_custom_call.1} parent=1 // pred_fallthru
      _
    // Predicated region
    $region14: #{tpu_custom_call.1} parent=1 // pred_check
      _
    $region15: #{tpu_custom_call.1} parent=1 // pred_check_branch
      %51 = sbr.rel (0) target = $region17
    $region16: #{tpu_custom_call.1} parent=1 // pred_region
      %s53 = ssub.s32 8192, 8192
      %54 = vsyncadd [#allocation9], %s53
      %s55 = sshll.u32 [#allocation8], 4
      %s56 = int_to_ptr.vmem [resolvable:$true] %s55
      %61 = dma.hbm_to_vmem [thread:$0]  %s3, 8192, %s56, [#allocation9], 128, 128, 8
    $region17: #{tpu_custom_call.1} parent=1 // pred_fallthru
      _
    // Predicated region
    $region18: #{tpu_custom_call.1} parent=1 // pred_check
      _
    $region19: #{tpu_custom_call.1} parent=1 // pred_check_branch
      %63 = sbr.rel (0) target = $region21
    $region20: #{tpu_custom_call.1} parent=1 // pred_region
      _
    $region21: #{tpu_custom_call.1} parent=1 // pred_fallthru
      _
    // Predicated region
    $region22: #{tpu_custom_call.1} parent=1 // pred_check
      _
    $region23: #{tpu_custom_call.1} parent=1 // pred_check_branch
      %65 = sbr.rel (0) target = $region25
    $region24: #{tpu_custom_call.1} parent=1 // pred_region
      %s67 = ssub.s32 2048, 2048
      %68 = vsyncadd [#allocation9], %s67
      %s69 = sshll.u32 [#allocation10], 4
      %s70 = int_to_ptr.vmem [resolvable:$true] %s69
      %75 = dma.hbm_to_vmem [thread:$0]  %s5, 2048, %s70, [#allocation9], 64, 64, 4
    $region25: #{tpu_custom_call.1} parent=1 // pred_fallthru
      _
    // Predicated region
    $region26: #{tpu_custom_call.1} parent=1 // pred_check
      _
    $region27: #{tpu_custom_call.1} parent=1 // pred_check_branch
      %77 = sbr.rel (0) target = $region29
    $region28: #{tpu_custom_call.1} parent=1 // pred_region
      _
    $region29: #{tpu_custom_call.1} parent=1 // pred_fallthru
      _
    // Predicated region
    $region30: #{tpu_custom_call.1} parent=1 // pred_check
      _
    $region31: #{tpu_custom_call.1} parent=1 // pred_check_branch
      %79 = sbr.rel (0) target = $region33
    $region32: #{tpu_custom_call.1} parent=1 // pred_region
      %80 = dma.done [#allocation3], 128
    $region33: #{tpu_custom_call.1} parent=1 // pred_fallthru
      _
    // Predicated region
    $region34: #{tpu_custom_call.1} parent=1 // pred_check
      _
    $region35: #{tpu_custom_call.1} parent=1 // pred_check_branch
      %82 = sbr.rel (0) target = $region37
    $region36: #{tpu_custom_call.1} parent=1 // pred_region
      %83 = dma.done [#allocation6], 1024
    $region37: #{tpu_custom_call.1} parent=1 // pred_fallthru
      _
    // Predicated region
    $region38: #{tpu_custom_call.1} parent=1 // pred_check
      _
    $region39: #{tpu_custom_call.1} parent=1 // pred_check_branch
      %85 = sbr.rel (0) target = $region41
    $region40: #{tpu_custom_call.1} parent=1 // pred_region
      %86 = dma.done [#allocation6], 64
    $region41: #{tpu_custom_call.1} parent=1 // pred_fallthru
      _
    // Predicated region
    $region42: #{tpu_custom_call.1} parent=1 // pred_check
      _
    $region43: #{tpu_custom_call.1} parent=1 // pred_check_branch
      %88 = sbr.rel (0) target = $region45
    $region44: #{tpu_custom_call.1} parent=1 // pred_region
      %89 = dma.done [#allocation9], 8192
    $region45: #{tpu_custom_call.1} parent=1 // pred_fallthru
      _
    // Predicated region
    $region46: #{tpu_custom_call.1} parent=1 // pred_check
      _
    $region47: #{tpu_custom_call.1} parent=1 // pred_check_branch
      %91 = sbr.rel (0) target = $region49
    $region48: #{tpu_custom_call.1} parent=1 // pred_region
      %92 = dma.done [#allocation9], 2048
    $region49: #{tpu_custom_call.1} parent=1 // pred_fallthru
      _
    %v94 = vld [vmem:[#allocation2] sm:$0xf]
    %v95 = vld [vmem:[#allocation2 + $0x4] sm:$0xf]
    %v96 = vld [vmem:[#allocation7] sm:$0xf]
    %v97 = vld [vmem:[%s4] sm:$0x3]
    %v98 = vld [vmem:[%s6] sm:$0x1]
    %v99 = vld [vmem:[#allocation5] sm:$0xff]
    %v100 = vld [vmem:[#allocation5 + $0x8] sm:$0xff]
    %v101 = vld [vmem:[#allocation5 + $0x10] sm:$0xff]
    %v102 = vld [vmem:[#allocation5 + $0x18] sm:$0xff]
    %v103 = vld [vmem:[#allocation5 + $0x20] sm:$0xff]
    %v104 = vld [vmem:[#allocation5 + $0x28] sm:$0xff]
    %v105 = vld [vmem:[#allocation5 + $0x30] sm:$0xff]
    %v106 = vld [vmem:[#allocation5 + $0x38] sm:$0xff]
    %v108 = vlaneseq
    %v109 = vshrl.u32 %v108, 7
    %v110 = vsub.s32 0, %v109
    %v111 = vrot.slane %v96, %v110
    %v112 = vlaneseq
    %v113 = vshrl.u32 %v112, 7
    %v114 = vsub.s32 1, %v113
    %v115 = vrot.slane %v96, %v114
    %v116 = vlaneseq
    %v117 = vshrl.u32 %v116, 7
    %v118 = vsub.s32 2, %v117
    %v119 = vrot.slane %v96, %v118
    %v120 = vlaneseq
    %v121 = vshrl.u32 %v120, 7
    %v122 = vsub.s32 3, %v121
    %v123 = vrot.slane %v96, %v122
    %v130 = vunpack.c.l.b16 %v94
    %v131 = vunpack.c.l.b16 %v95
    %v132 = vpack.c.b16 %v131, %v130
    %v141 = vunpack.c.l.b16 %v99
    %v142 = vunpack.c.h.b16 %v99
    %v143 = vunpack.c.l.b16 %v100
    %v144 = vunpack.c.h.b16 %v100
    %v145 = vunpack.c.l.b16 %v101
    %v146 = vunpack.c.h.b16 %v101
    %v147 = vunpack.c.l.b16 %v102
    %v148 = vunpack.c.h.b16 %v102
    %v149 = vunpack.c.l.b16 %v103
    %v150 = vunpack.c.h.b16 %v103
    %v151 = vunpack.c.l.b16 %v104
    %v152 = vunpack.c.h.b16 %v104
    %v153 = vunpack.c.l.b16 %v105
    %v154 = vunpack.c.h.b16 %v105
    %v155 = vunpack.c.l.b16 %v106
    %v156 = vunpack.c.h.b16 %v106
    %v157 = vpack.c.b16 %v145, %v141
    %v158 = vpack.c.b16 %v146, %v142
    %v159 = vpack.c.b16 %v147, %v143
    %v160 = vpack.c.b16 %v148, %v144
    %v161 = vpack.c.b16 %v153, %v149
    %v162 = vpack.c.b16 %v154, %v150
    %v163 = vpack.c.b16 %v155, %v151
    %v164 = vpack.c.b16 %v156, %v152
    %vm173 = vcmask 261120
    %v175 = vsel %vm173, %v132, 0
    %177 = vmatprep.subr.bf16.mxu0 0
    %178 = vmatpush1.bf16.msra.mxu0 0
    %179 = vmatprep.subr.bf16.mxu0 0
    %180 = vmatpush1.bf16.msra.mxu0 0
    %181 = vmatprep.subr.bf16.mxu0 0
    %182 = vmatpush1.bf16.msra.mxu0 0
    %183 = vmatprep.subr.bf16.mxu0 0
    %184 = vmatpush1.bf16.msra.mxu0 0
    %185 = vmatprep.subr.bf16.mxu0 0
    %186 = vmatpush1.bf16.msra.mxu0 0
    %187 = vmatprep.subr.bf16.mxu0 0
    %188 = vmatpush1.bf16.msra.mxu0 0
    %189 = vmatprep.subr.bf16.mxu0 %v162
    %190 = vmatpush1.bf16.msra.mxu0 %v161
    %191 = vmatprep.subr.bf16.mxu0 %v158
    %192 = vmatpush1.bf16.msra.mxu0 %v157
    %193 = vmatprep.subr.bf16.mxu0 0
    %194 = vmatpush2.bf16.msra.mxu0 0
    %195 = vmatprep.subr.bf16.mxu0 0
    %196 = vmatpush2.bf16.msra.mxu0 0
    %197 = vmatprep.subr.bf16.mxu0 0
    %198 = vmatpush2.bf16.msra.mxu0 0
    %199 = vmatprep.subr.bf16.mxu0 0
    %200 = vmatpush2.bf16.msra.mxu0 0
    %201 = vmatprep.subr.bf16.mxu0 0
    %202 = vmatpush2.bf16.msra.mxu0 0
    %203 = vmatprep.subr.bf16.mxu0 0
    %204 = vmatpush2.bf16.msra.mxu0 0
    %205 = vmatprep.subr.bf16.mxu0 0
    %206 = vmatpush2.bf16.msra.mxu0 0
    %207 = vmatprep.subr.bf16.mxu0 0
    %208 = vmatpush2.bf16.msra.mxu0 0
    %209 = vmatprep.mubr.bf16.mxu0 0
    %210 = vmatmul.mubr.bf16.gmra.mxu0 %v175
    %v211 = vpop.f32.mrf.mxu0
    %v212 = vadd.f32 %v111, %v211
    %v213 = vpop.f32.mrf.mxu0
    %v214 = vadd.f32 %v115, %v213
    %v215 = vpop.f32.mrf.mxu0
    %v216 = vadd.f32 %v111, %v215
    %v217 = vpop.f32.mrf.mxu0
    %v218 = vadd.f32 %v115, %v217
    %219 = vdwg.mxu0
    %220 = vmatprep.subr.bf16.mxu0 0
    %221 = vmatpush1.bf16.msra.mxu0 0
    %222 = vmatprep.subr.bf16.mxu0 0
    %223 = vmatpush1.bf16.msra.mxu0 0
    %224 = vmatprep.subr.bf16.mxu0 0
    %225 = vmatpush1.bf16.msra.mxu0 0
    %226 = vmatprep.subr.bf16.mxu0 0
    %227 = vmatpush1.bf16.msra.mxu0 0
    %228 = vmatprep.subr.bf16.mxu0 0
    %229 = vmatpush1.bf16.msra.mxu0 0
    %230 = vmatprep.subr.bf16.mxu0 0
    %231 = vmatpush1.bf16.msra.mxu0 0
    %232 = vmatprep.subr.bf16.mxu0 %v164
    %233 = vmatpush1.bf16.msra.mxu0 %v163
    %234 = vmatprep.subr.bf16.mxu0 %v160
    %235 = vmatpush1.bf16.msra.mxu0 %v159
    %236 = vmatprep.subr.bf16.mxu0 0
    %237 = vmatpush2.bf16.msra.mxu0 0
    %238 = vmatprep.subr.bf16.mxu0 0
    %239 = vmatpush2.bf16.msra.mxu0 0
    %240 = vmatprep.subr.bf16.mxu0 0
    %241 = vmatpush2.bf16.msra.mxu0 0
    %242 = vmatprep.subr.bf16.mxu0 0
    %243 = vmatpush2.bf16.msra.mxu0 0
    %244 = vmatprep.subr.bf16.mxu0 0
    %245 = vmatpush2.bf16.msra.mxu0 0
    %246 = vmatprep.subr.bf16.mxu0 0
    %247 = vmatpush2.bf16.msra.mxu0 0
    %248 = vmatprep.subr.bf16.mxu0 0
    %249 = vmatpush2.bf16.msra.mxu0 0
    %250 = vmatprep.subr.bf16.mxu0 0
    %251 = vmatpush2.bf16.msra.mxu0 0
    %252 = vmatprep.mubr.bf16.mxu0 0
    %253 = vmatmul.mubr.bf16.gmra.mxu0 %v175
    %v254 = vpop.f32.mrf.mxu0
    %v255 = vadd.f32 %v119, %v254
    %v256 = vpop.f32.mrf.mxu0
    %v257 = vadd.f32 %v123, %v256
    %v258 = vpop.f32.mrf.mxu0
    %v259 = vadd.f32 %v119, %v258
    %v260 = vpop.f32.mrf.mxu0
    %v261 = vadd.f32 %v123, %v260
    %262 = vdwg.mxu0
    %v263 = vmax.f32 %v212, 0.0
    %v264 = vmax.f32 %v214, 0.0
    %v265 = vmax.f32 %v255, 0.0
    %v266 = vmax.f32 %v257, 0.0
    %v267 = vmax.f32 %v216, 0.0
    %v268 = vmax.f32 %v218, 0.0
    %v269 = vmax.f32 %v259, 0.0
    %v270 = vmax.f32 %v261, 0.0
    %v271 = vpack.c.bf16 %v267, %v263
    %v272 = vpack.c.bf16 %v268, %v264
    %v273 = vpack.c.bf16 %v269, %v265
    %v274 = vpack.c.bf16 %v270, %v266
    %v275 = vld [vmem:[#allocation8] sm:$0xff]
    %v276 = vld [vmem:[#allocation8 + $0x8] sm:$0xff]
    %v277 = vld [vmem:[#allocation8 + $0x10] sm:$0xff]
    %v278 = vld [vmem:[#allocation8 + $0x18] sm:$0xff]
    %v279 = vld [vmem:[#allocation8 + $0x20] sm:$0xff]
    %v280 = vld [vmem:[#allocation8 + $0x28] sm:$0xff]
    %v281 = vld [vmem:[#allocation8 + $0x30] sm:$0xff]
    %v282 = vld [vmem:[#allocation8 + $0x38] sm:$0xff]
    %v283 = vld [vmem:[#allocation8 + $0x40] sm:$0xff]
    %v284 = vld [vmem:[#allocation8 + $0x48] sm:$0xff]
    %v285 = vld [vmem:[#allocation8 + $0x50] sm:$0xff]
    %v286 = vld [vmem:[#allocation8 + $0x58] sm:$0xff]
    %v287 = vld [vmem:[#allocation8 + $0x60] sm:$0xff]
    %v288 = vld [vmem:[#allocation8 + $0x68] sm:$0xff]
    %v289 = vld [vmem:[#allocation8 + $0x70] sm:$0xff]
    %v290 = vld [vmem:[#allocation8 + $0x78] sm:$0xff]
    %v291 = vld [vmem:[#allocation8 + $0x80] sm:$0xff]
    %v292 = vld [vmem:[#allocation8 + $0x88] sm:$0xff]
    %v293 = vld [vmem:[#allocation8 + $0x90] sm:$0xff]
    %v294 = vld [vmem:[#allocation8 + $0x98] sm:$0xff]
    %v295 = vld [vmem:[#allocation8 + $0xa0] sm:$0xff]
    %v296 = vld [vmem:[#allocation8 + $0xa8] sm:$0xff]
    %v297 = vld [vmem:[#allocation8 + $0xb0] sm:$0xff]
    %v298 = vld [vmem:[#allocation8 + $0xb8] sm:$0xff]
    %v299 = vld [vmem:[#allocation8 + $0xc0] sm:$0xff]
    %v300 = vld [vmem:[#allocation8 + $0xc8] sm:$0xff]
    %v301 = vld [vmem:[#allocation8 + $0xd0] sm:$0xff]
    %v302 = vld [vmem:[#allocation8 + $0xd8] sm:$0xff]
    %v303 = vld [vmem:[#allocation8 + $0xe0] sm:$0xff]
    %v304 = vld [vmem:[#allocation8 + $0xe8] sm:$0xff]
    %v305 = vld [vmem:[#allocation8 + $0xf0] sm:$0xff]
    %v306 = vld [vmem:[#allocation8 + $0xf8] sm:$0xff]
    %v307 = vld [vmem:[#allocation8 + $0x100] sm:$0xff]
    %v308 = vld [vmem:[#allocation8 + $0x108] sm:$0xff]
    %v309 = vld [vmem:[#allocation8 + $0x110] sm:$0xff]
    %v310 = vld [vmem:[#allocation8 + $0x118] sm:$0xff]
    %v311 = vld [vmem:[#allocation8 + $0x120] sm:$0xff]
    %v312 = vld [vmem:[#allocation8 + $0x128] sm:$0xff]
    %v313 = vld [vmem:[#allocation8 + $0x130] sm:$0xff]
    %v314 = vld [vmem:[#allocation8 + $0x138] sm:$0xff]
    %v315 = vld [vmem:[#allocation8 + $0x140] sm:$0xff]
    %v316 = vld [vmem:[#allocation8 + $0x148] sm:$0xff]
    %v317 = vld [vmem:[#allocation8 + $0x150] sm:$0xff]
    %v318 = vld [vmem:[#allocation8 + $0x158] sm:$0xff]
    %v319 = vld [vmem:[#allocation8 + $0x160] sm:$0xff]
    %v320 = vld [vmem:[#allocation8 + $0x168] sm:$0xff]
    %v321 = vld [vmem:[#allocation8 + $0x170] sm:$0xff]
    %v322 = vld [vmem:[#allocation8 + $0x178] sm:$0xff]
    %v323 = vld [vmem:[#allocation8 + $0x180] sm:$0xff]
    %v324 = vld [vmem:[#allocation8 + $0x188] sm:$0xff]
    %v325 = vld [vmem:[#allocation8 + $0x190] sm:$0xff]
    %v326 = vld [vmem:[#allocation8 + $0x198] sm:$0xff]
    %v327 = vld [vmem:[#allocation8 + $0x1a0] sm:$0xff]
    %v328 = vld [vmem:[#allocation8 + $0x1a8] sm:$0xff]
    %v329 = vld [vmem:[#allocation8 + $0x1b0] sm:$0xff]
    %v330 = vld [vmem:[#allocation8 + $0x1b8] sm:$0xff]
    %v331 = vld [vmem:[#allocation8 + $0x1c0] sm:$0xff]
    %v332 = vld [vmem:[#allocation8 + $0x1c8] sm:$0xff]
    %v333 = vld [vmem:[#allocation8 + $0x1d0] sm:$0xff]
    %v334 = vld [vmem:[#allocation8 + $0x1d8] sm:$0xff]
    %v335 = vld [vmem:[#allocation8 + $0x1e0] sm:$0xff]
    %v336 = vld [vmem:[#allocation8 + $0x1e8] sm:$0xff]
    %v337 = vld [vmem:[#allocation8 + $0x1f0] sm:$0xff]
    %v338 = vld [vmem:[#allocation8 + $0x1f8] sm:$0xff]
    %v340 = vlaneseq
    %v341 = vshrl.u32 %v340, 7
    %v342 = vsub.s32 0, %v341
    %v343 = vrot.slane %v97, %v342
    %v344 = vlaneseq
    %v345 = vshrl.u32 %v344, 7
    %v346 = vsub.s32 1, %v345
    %v347 = vrot.slane %v97, %v346
    %v414 = vunpack.c.l.b16 %v275
    %v415 = vunpack.c.h.b16 %v275
    %v416 = vunpack.c.l.b16 %v276
    %v417 = vunpack.c.h.b16 %v276
    %v418 = vunpack.c.l.b16 %v277
    %v419 = vunpack.c.h.b16 %v277
    %v420 = vunpack.c.l.b16 %v278
    %v421 = vunpack.c.h.b16 %v278
    %v422 = vunpack.c.l.b16 %v279
    %v423 = vunpack.c.h.b16 %v279
    %v424 = vunpack.c.l.b16 %v280
    %v425 = vunpack.c.h.b16 %v280
    %v426 = vunpack.c.l.b16 %v281
    %v427 = vunpack.c.h.b16 %v281
    %v428 = vunpack.c.l.b16 %v282
    %v429 = vunpack.c.h.b16 %v282
    %v430 = vunpack.c.l.b16 %v283
    %v431 = vunpack.c.h.b16 %v283
    %v432 = vunpack.c.l.b16 %v284
    %v433 = vunpack.c.h.b16 %v284
    %v434 = vunpack.c.l.b16 %v285
    %v435 = vunpack.c.h.b16 %v285
    %v436 = vunpack.c.l.b16 %v286
    %v437 = vunpack.c.h.b16 %v286
    %v438 = vunpack.c.l.b16 %v287
    %v439 = vunpack.c.h.b16 %v287
    %v440 = vunpack.c.l.b16 %v288
    %v441 = vunpack.c.h.b16 %v288
    %v442 = vunpack.c.l.b16 %v289
    %v443 = vunpack.c.h.b16 %v289
    %v444 = vunpack.c.l.b16 %v290
    %v445 = vunpack.c.h.b16 %v290
    %v446 = vunpack.c.l.b16 %v291
    %v447 = vunpack.c.h.b16 %v291
    %v448 = vunpack.c.l.b16 %v292
    %v449 = vunpack.c.h.b16 %v292
    %v450 = vunpack.c.l.b16 %v293
    %v451 = vunpack.c.h.b16 %v293
    %v452 = vunpack.c.l.b16 %v294
    %v453 = vunpack.c.h.b16 %v294
    %v454 = vunpack.c.l.b16 %v295
    %v455 = vunpack.c.h.b16 %v295
    %v456 = vunpack.c.l.b16 %v296
    %v457 = vunpack.c.h.b16 %v296
    %v458 = vunpack.c.l.b16 %v297
    %v459 = vunpack.c.h.b16 %v297
    %v460 = vunpack.c.l.b16 %v298
    %v461 = vunpack.c.h.b16 %v298
    %v462 = vunpack.c.l.b16 %v299
    %v463 = vunpack.c.h.b16 %v299
    %v464 = vunpack.c.l.b16 %v300
    %v465 = vunpack.c.h.b16 %v300
    %v466 = vunpack.c.l.b16 %v301
    %v467 = vunpack.c.h.b16 %v301
    %v468 = vunpack.c.l.b16 %v302
    %v469 = vunpack.c.h.b16 %v302
    %v470 = vunpack.c.l.b16 %v303
    %v471 = vunpack.c.h.b16 %v303
    %v472 = vunpack.c.l.b16 %v304
    %v473 = vunpack.c.h.b16 %v304
    %v474 = vunpack.c.l.b16 %v305
    %v475 = vunpack.c.h.b16 %v305
    %v476 = vunpack.c.l.b16 %v306
    %v477 = vunpack.c.h.b16 %v306
    %v478 = vunpack.c.l.b16 %v307
    %v479 = vunpack.c.h.b16 %v307
    %v480 = vunpack.c.l.b16 %v308
    %v481 = vunpack.c.h.b16 %v308
    %v482 = vunpack.c.l.b16 %v309
    %v483 = vunpack.c.h.b16 %v309
    %v484 = vunpack.c.l.b16 %v310
    %v485 = vunpack.c.h.b16 %v310
    %v486 = vunpack.c.l.b16 %v311
    %v487 = vunpack.c.h.b16 %v311
    %v488 = vunpack.c.l.b16 %v312
    %v489 = vunpack.c.h.b16 %v312
    %v490 = vunpack.c.l.b16 %v313
    %v491 = vunpack.c.h.b16 %v313
    %v492 = vunpack.c.l.b16 %v314
    %v493 = vunpack.c.h.b16 %v314
    %v494 = vunpack.c.l.b16 %v315
    %v495 = vunpack.c.h.b16 %v315
    %v496 = vunpack.c.l.b16 %v316
    %v497 = vunpack.c.h.b16 %v316
    %v498 = vunpack.c.l.b16 %v317
    %v499 = vunpack.c.h.b16 %v317
    %v500 = vunpack.c.l.b16 %v318
    %v501 = vunpack.c.h.b16 %v318
    %v502 = vunpack.c.l.b16 %v319
    %v503 = vunpack.c.h.b16 %v319
    %v504 = vunpack.c.l.b16 %v320
    %v505 = vunpack.c.h.b16 %v320
    %v506 = vunpack.c.l.b16 %v321
    %v507 = vunpack.c.h.b16 %v321
    %v508 = vunpack.c.l.b16 %v322
    %v509 = vunpack.c.h.b16 %v322
    %v510 = vunpack.c.l.b16 %v323
    %v511 = vunpack.c.h.b16 %v323
    %v512 = vunpack.c.l.b16 %v324
    %v513 = vunpack.c.h.b16 %v324
    %v514 = vunpack.c.l.b16 %v325
    %v515 = vunpack.c.h.b16 %v325
    %v516 = vunpack.c.l.b16 %v326
    %v517 = vunpack.c.h.b16 %v326
    %v518 = vunpack.c.l.b16 %v327
    %v519 = vunpack.c.h.b16 %v327
    %v520 = vunpack.c.l.b16 %v328
    %v521 = vunpack.c.h.b16 %v328
    %v522 = vunpack.c.l.b16 %v329
    %v523 = vunpack.c.h.b16 %v329
    %v524 = vunpack.c.l.b16 %v330
    %v525 = vunpack.c.h.b16 %v330
    %v526 = vunpack.c.l.b16 %v331
    %v527 = vunpack.c.h.b16 %v331
    %v528 = vunpack.c.l.b16 %v332
    %v529 = vunpack.c.h.b16 %v332
    %v530 = vunpack.c.l.b16 %v333
    %v531 = vunpack.c.h.b16 %v333
    %v532 = vunpack.c.l.b16 %v334
    %v533 = vunpack.c.h.b16 %v334
    %v534 = vunpack.c.l.b16 %v335
    %v535 = vunpack.c.h.b16 %v335
    %v536 = vunpack.c.l.b16 %v336
    %v537 = vunpack.c.h.b16 %v336
    %v538 = vunpack.c.l.b16 %v337
    %v539 = vunpack.c.h.b16 %v337
    %v540 = vunpack.c.l.b16 %v338
    %v541 = vunpack.c.h.b16 %v338
    %v542 = vpack.c.b16 %v416, %v414
    %v543 = vpack.c.b16 %v417, %v415
    %v544 = vpack.c.b16 %v420, %v418
    %v545 = vpack.c.b16 %v421, %v419
    %v546 = vpack.c.b16 %v424, %v422
    %v547 = vpack.c.b16 %v425, %v423
    %v548 = vpack.c.b16 %v428, %v426
    %v549 = vpack.c.b16 %v429, %v427
    %v550 = vpack.c.b16 %v432, %v430
    %v551 = vpack.c.b16 %v433, %v431
    %v552 = vpack.c.b16 %v436, %v434
    %v553 = vpack.c.b16 %v437, %v435
    %v554 = vpack.c.b16 %v440, %v438
    %v555 = vpack.c.b16 %v441, %v439
    %v556 = vpack.c.b16 %v444, %v442
    %v557 = vpack.c.b16 %v445, %v443
    %v558 = vpack.c.b16 %v448, %v446
    %v559 = vpack.c.b16 %v449, %v447
    %v560 = vpack.c.b16 %v452, %v450
    %v561 = vpack.c.b16 %v453, %v451
    %v562 = vpack.c.b16 %v456, %v454
    %v563 = vpack.c.b16 %v457, %v455
    %v564 = vpack.c.b16 %v460, %v458
    %v565 = vpack.c.b16 %v461, %v459
    %v566 = vpack.c.b16 %v464, %v462
    %v567 = vpack.c.b16 %v465, %v463
    %v568 = vpack.c.b16 %v468, %v466
    %v569 = vpack.c.b16 %v469, %v467
    %v570 = vpack.c.b16 %v472, %v470
    %v571 = vpack.c.b16 %v473, %v471
    %v572 = vpack.c.b16 %v476, %v474
    %v573 = vpack.c.b16 %v477, %v475
    %v574 = vpack.c.b16 %v480, %v478
    %v575 = vpack.c.b16 %v481, %v479
    %v576 = vpack.c.b16 %v484, %v482
    %v577 = vpack.c.b16 %v485, %v483
    %v578 = vpack.c.b16 %v488, %v486
    %v579 = vpack.c.b16 %v489, %v487
    %v580 = vpack.c.b16 %v492, %v490
    %v581 = vpack.c.b16 %v493, %v491
    %v582 = vpack.c.b16 %v496, %v494
    %v583 = vpack.c.b16 %v497, %v495
    %v584 = vpack.c.b16 %v500, %v498
    %v585 = vpack.c.b16 %v501, %v499
    %v586 = vpack.c.b16 %v504, %v502
    %v587 = vpack.c.b16 %v505, %v503
    %v588 = vpack.c.b16 %v508, %v506
    %v589 = vpack.c.b16 %v509, %v507
    %v590 = vpack.c.b16 %v512, %v510
    %v591 = vpack.c.b16 %v513, %v511
    %v592 = vpack.c.b16 %v516, %v514
    %v593 = vpack.c.b16 %v517, %v515
    %v594 = vpack.c.b16 %v520, %v518
    %v595 = vpack.c.b16 %v521, %v519
    %v596 = vpack.c.b16 %v524, %v522
    %v597 = vpack.c.b16 %v525, %v523
    %v598 = vpack.c.b16 %v528, %v526
    %v599 = vpack.c.b16 %v529, %v527
    %v600 = vpack.c.b16 %v532, %v530
    %v601 = vpack.c.b16 %v533, %v531
    %v602 = vpack.c.b16 %v536, %v534
    %v603 = vpack.c.b16 %v537, %v535
    %v604 = vpack.c.b16 %v540, %v538
    %v605 = vpack.c.b16 %v541, %v539
    %670 = vmatprep.subr.bf16.mxu0 %v557
    %671 = vmatpush1.bf16.msra.mxu0 %v556
    %672 = vmatprep.subr.bf16.mxu0 %v555
    %673 = vmatpush1.bf16.msra.mxu0 %v554
    %674 = vmatprep.subr.bf16.mxu0 %v553
    %675 = vmatpush1.bf16.msra.mxu0 %v552
    %676 = vmatprep.subr.bf16.mxu0 %v551
    %677 = vmatpush1.bf16.msra.mxu0 %v550
    %678 = vmatprep.subr.bf16.mxu0 %v549
    %679 = vmatpush1.bf16.msra.mxu0 %v548
    %680 = vmatprep.subr.bf16.mxu0 %v547
    %681 = vmatpush1.bf16.msra.mxu0 %v546
    %682 = vmatprep.subr.bf16.mxu0 %v545
    %683 = vmatpush1.bf16.msra.mxu0 %v544
    %684 = vmatprep.subr.bf16.mxu0 %v543
    %685 = vmatpush1.bf16.msra.mxu0 %v542
    %686 = vmatprep.subr.bf16.mxu0 %v573
    %687 = vmatpush2.bf16.msra.mxu0 %v572
    %688 = vmatprep.subr.bf16.mxu0 %v571
    %689 = vmatpush2.bf16.msra.mxu0 %v570
    %690 = vmatprep.subr.bf16.mxu0 %v569
    %691 = vmatpush2.bf16.msra.mxu0 %v568
    %692 = vmatprep.subr.bf16.mxu0 %v567
    %693 = vmatpush2.bf16.msra.mxu0 %v566
    %694 = vmatprep.subr.bf16.mxu0 %v565
    %695 = vmatpush2.bf16.msra.mxu0 %v564
    %696 = vmatprep.subr.bf16.mxu0 %v563
    %697 = vmatpush2.bf16.msra.mxu0 %v562
    %698 = vmatprep.subr.bf16.mxu0 %v561
    %699 = vmatpush2.bf16.msra.mxu0 %v560
    %700 = vmatprep.subr.bf16.mxu0 %v559
    %701 = vmatpush2.bf16.msra.mxu0 %v558
    %702 = vmatprep.mubr.bf16.mxu0 %v272
    %703 = vmatmul.mubr.bf16.gmra.mxu0 %v271
    %v704 = vpop.f32.mrf.mxu0
    %v705 = vadd.f32 %v343, %v704
    %v706 = vpop.f32.mrf.mxu0
    %v707 = vadd.f32 %v347, %v706
    %v708 = vpop.f32.mrf.mxu0
    %v709 = vadd.f32 %v343, %v708
    %v710 = vpop.f32.mrf.mxu0
    %v711 = vadd.f32 %v347, %v710
    %712 = vdwg.mxu0
    %713 = vmatprep.subr.bf16.mxu0 %v589
    %714 = vmatpush1.bf16.msra.mxu0 %v588
    %715 = vmatprep.subr.bf16.mxu0 %v587
    %716 = vmatpush1.bf16.msra.mxu0 %v586
    %717 = vmatprep.subr.bf16.mxu0 %v585
    %718 = vmatpush1.bf16.msra.mxu0 %v584
    %719 = vmatprep.subr.bf16.mxu0 %v583
    %720 = vmatpush1.bf16.msra.mxu0 %v582
    %721 = vmatprep.subr.bf16.mxu0 %v581
    %722 = vmatpush1.bf16.msra.mxu0 %v580
    %723 = vmatprep.subr.bf16.mxu0 %v579
    %724 = vmatpush1.bf16.msra.mxu0 %v578
    %725 = vmatprep.subr.bf16.mxu0 %v577
    %726 = vmatpush1.bf16.msra.mxu0 %v576
    %727 = vmatprep.subr.bf16.mxu0 %v575
    %728 = vmatpush1.bf16.msra.mxu0 %v574
    %729 = vmatprep.subr.bf16.mxu0 %v605
    %730 = vmatpush2.bf16.msra.mxu0 %v604
    %731 = vmatprep.subr.bf16.mxu0 %v603
    %732 = vmatpush2.bf16.msra.mxu0 %v602
    %733 = vmatprep.subr.bf16.mxu0 %v601
    %734 = vmatpush2.bf16.msra.mxu0 %v600
    %735 = vmatprep.subr.bf16.mxu0 %v599
    %736 = vmatpush2.bf16.msra.mxu0 %v598
    %737 = vmatprep.subr.bf16.mxu0 %v597
    %738 = vmatpush2.bf16.msra.mxu0 %v596
    %739 = vmatprep.subr.bf16.mxu0 %v595
    %740 = vmatpush2.bf16.msra.mxu0 %v594
    %741 = vmatprep.subr.bf16.mxu0 %v593
    %742 = vmatpush2.bf16.msra.mxu0 %v592
    %743 = vmatprep.subr.bf16.mxu0 %v591
    %744 = vmatpush2.bf16.msra.mxu0 %v590
    %745 = vmatprep.mubr.bf16.mxu0 %v274
    %746 = vmatmul.mubr.bf16.gmra.mxu0 %v273
    %v747 = vpop.f32.mrf.mxu0
    %v748 = vadd.f32 %v705, %v747
    %v749 = vpop.f32.mrf.mxu0
    %v750 = vadd.f32 %v707, %v749
    %v751 = vpop.f32.mrf.mxu0
    %v752 = vadd.f32 %v709, %v751
    %v753 = vpop.f32.mrf.mxu0
    %v754 = vadd.f32 %v711, %v753
    %755 = vdwg.mxu0
    %v756 = vmax.f32 %v748, 0.0
    %v757 = vmax.f32 %v750, 0.0
    %v758 = vmax.f32 %v752, 0.0
    %v759 = vmax.f32 %v754, 0.0
    %v760 = vpack.c.bf16 %v758, %v756
    %v761 = vpack.c.bf16 %v759, %v757
    %v762 = vld [vmem:[#allocation10] sm:$0xf]
    %v763 = vld [vmem:[#allocation10 + $0x4] sm:$0xf]
    %v764 = vld [vmem:[#allocation10 + $0x8] sm:$0xf]
    %v765 = vld [vmem:[#allocation10 + $0xc] sm:$0xf]
    %v766 = vld [vmem:[#allocation10 + $0x10] sm:$0xf]
    %v767 = vld [vmem:[#allocation10 + $0x14] sm:$0xf]
    %v768 = vld [vmem:[#allocation10 + $0x18] sm:$0xf]
    %v769 = vld [vmem:[#allocation10 + $0x1c] sm:$0xf]
    %v770 = vld [vmem:[#allocation10 + $0x20] sm:$0xf]
    %v771 = vld [vmem:[#allocation10 + $0x24] sm:$0xf]
    %v772 = vld [vmem:[#allocation10 + $0x28] sm:$0xf]
    %v773 = vld [vmem:[#allocation10 + $0x2c] sm:$0xf]
    %v774 = vld [vmem:[#allocation10 + $0x30] sm:$0xf]
    %v775 = vld [vmem:[#allocation10 + $0x34] sm:$0xf]
    %v776 = vld [vmem:[#allocation10 + $0x38] sm:$0xf]
    %v777 = vld [vmem:[#allocation10 + $0x3c] sm:$0xf]
    %v778 = vld [vmem:[#allocation10 + $0x40] sm:$0xf]
    %v779 = vld [vmem:[#allocation10 + $0x44] sm:$0xf]
    %v780 = vld [vmem:[#allocation10 + $0x48] sm:$0xf]
    %v781 = vld [vmem:[#allocation10 + $0x4c] sm:$0xf]
    %v782 = vld [vmem:[#allocation10 + $0x50] sm:$0xf]
    %v783 = vld [vmem:[#allocation10 + $0x54] sm:$0xf]
    %v784 = vld [vmem:[#allocation10 + $0x58] sm:$0xf]
    %v785 = vld [vmem:[#allocation10 + $0x5c] sm:$0xf]
    %v786 = vld [vmem:[#allocation10 + $0x60] sm:$0xf]
    %v787 = vld [vmem:[#allocation10 + $0x64] sm:$0xf]
    %v788 = vld [vmem:[#allocation10 + $0x68] sm:$0xf]
    %v789 = vld [vmem:[#allocation10 + $0x6c] sm:$0xf]
    %v790 = vld [vmem:[#allocation10 + $0x70] sm:$0xf]
    %v791 = vld [vmem:[#allocation10 + $0x74] sm:$0xf]
    %v792 = vld [vmem:[#allocation10 + $0x78] sm:$0xf]
    %v793 = vld [vmem:[#allocation10 + $0x7c] sm:$0xf]
    %v795 = vlaneseq
    %v796 = vshrl.u32 %v795, 7
    %v797 = vsub.s32 0, %v796
    %v798 = vrot.slane %v98, %v797
    %v832 = vunpack.c.l.b16 %v762
    %v833 = vunpack.c.l.b16 %v763
    %v834 = vunpack.c.l.b16 %v764
    %v835 = vunpack.c.l.b16 %v765
    %v836 = vunpack.c.l.b16 %v766
    %v837 = vunpack.c.l.b16 %v767
    %v838 = vunpack.c.l.b16 %v768
    %v839 = vunpack.c.l.b16 %v769
    %v840 = vunpack.c.l.b16 %v770
    %v841 = vunpack.c.l.b16 %v771
    %v842 = vunpack.c.l.b16 %v772
    %v843 = vunpack.c.l.b16 %v773
    %v844 = vunpack.c.l.b16 %v774
    %v845 = vunpack.c.l.b16 %v775
    %v846 = vunpack.c.l.b16 %v776
    %v847 = vunpack.c.l.b16 %v777
    %v848 = vunpack.c.l.b16 %v778
    %v849 = vunpack.c.l.b16 %v779
    %v850 = vunpack.c.l.b16 %v780
    %v851 = vunpack.c.l.b16 %v781
    %v852 = vunpack.c.l.b16 %v782
    %v853 = vunpack.c.l.b16 %v783
    %v854 = vunpack.c.l.b16 %v784
    %v855 = vunpack.c.l.b16 %v785
    %v856 = vunpack.c.l.b16 %v786
    %v857 = vunpack.c.l.b16 %v787
    %v858 = vunpack.c.l.b16 %v788
    %v859 = vunpack.c.l.b16 %v789
    %v860 = vunpack.c.l.b16 %v790
    %v861 = vunpack.c.l.b16 %v791
    %v862 = vunpack.c.l.b16 %v792
    %v863 = vunpack.c.l.b16 %v793
    %v864 = vpack.c.b16 %v833, %v832
    %v865 = vpack.c.b16 %v835, %v834
    %v866 = vpack.c.b16 %v837, %v836
    %v867 = vpack.c.b16 %v839, %v838
    %v868 = vpack.c.b16 %v841, %v840
    %v869 = vpack.c.b16 %v843, %v842
    %v870 = vpack.c.b16 %v845, %v844
    %v871 = vpack.c.b16 %v847, %v846
    %v872 = vpack.c.b16 %v849, %v848
    %v873 = vpack.c.b16 %v851, %v850
    %v874 = vpack.c.b16 %v853, %v852
    %v875 = vpack.c.b16 %v855, %v854
    %v876 = vpack.c.b16 %v857, %v856
    %v877 = vpack.c.b16 %v859, %v858
    %v878 = vpack.c.b16 %v861, %v860
    %v879 = vpack.c.b16 %v863, %v862
    %896 = vmatprep.subr.bf16.mxu0 0
    %897 = vmatpush1.bf16.msra.mxu0 %v871
    %898 = vmatprep.subr.bf16.mxu0 0
    %899 = vmatpush1.bf16.msra.mxu0 %v870
    %900 = vmatprep.subr.bf16.mxu0 0
    %901 = vmatpush1.bf16.msra.mxu0 %v869
    %902 = vmatprep.subr.bf16.mxu0 0
    %903 = vmatpush1.bf16.msra.mxu0 %v868
    %904 = vmatprep.subr.bf16.mxu0 0
    %905 = vmatpush1.bf16.msra.mxu0 %v867
    %906 = vmatprep.subr.bf16.mxu0 0
    %907 = vmatpush1.bf16.msra.mxu0 %v866
    %908 = vmatprep.subr.bf16.mxu0 0
    %909 = vmatpush1.bf16.msra.mxu0 %v865
    %910 = vmatprep.subr.bf16.mxu0 0
    %911 = vmatpush1.bf16.msra.mxu0 %v864
    %912 = vmatprep.subr.bf16.mxu0 0
    %913 = vmatpush2.bf16.msra.mxu0 %v879
    %914 = vmatprep.subr.bf16.mxu0 0
    %915 = vmatpush2.bf16.msra.mxu0 %v878
    %916 = vmatprep.subr.bf16.mxu0 0
    %917 = vmatpush2.bf16.msra.mxu0 %v877
    %918 = vmatprep.subr.bf16.mxu0 0
    %919 = vmatpush2.bf16.msra.mxu0 %v876
    %920 = vmatprep.subr.bf16.mxu0 0
    %921 = vmatpush2.bf16.msra.mxu0 %v875
    %922 = vmatprep.subr.bf16.mxu0 0
    %923 = vmatpush2.bf16.msra.mxu0 %v874
    %924 = vmatprep.subr.bf16.mxu0 0
    %925 = vmatpush2.bf16.msra.mxu0 %v873
    %926 = vmatprep.subr.bf16.mxu0 0
    %927 = vmatpush2.bf16.msra.mxu0 %v872
    %928 = vmatprep.mubr.bf16.mxu0 %v761
    %929 = vmatmul.mubr.bf16.gmra.mxu0 %v760
    %v930 = vpop.f32.mrf.mxu0
    %v931 = vadd.f32 %v798, %v930
    %v932 = vpop.f32.mrf.mxu0
    %v933 = vpop.f32.mrf.mxu0
    %v934 = vadd.f32 %v798, %v933
    %v935 = vpop.f32.mrf.mxu0
    %936 = vdwg.mxu0
    %v937 = vtanh.pop %v931
    %v938 = vtanh.pop %v934
    %939 = vst [vmem:[#allocation11] sm:$0xff] %v937
    %940 = vst [vmem:[#allocation11 + $0x8] sm:$0xff] %v938
    // Predicated region
    $region50: #{tpu_custom_call.1} parent=1 // pred_check
      _
    $region51: #{tpu_custom_call.1} parent=1 // pred_check_branch
      %942 = sbr.rel (0) target = $region53
    $region52: #{tpu_custom_call.1} parent=1 // pred_region
      %s944 = ssub.s32 256, 256
      %945 = vsyncadd [#allocation4], %s944
      %s946 = sshll.u32 [#allocation11], 4
      %s947 = int_to_ptr.vmem [resolvable:$true] %s946
      %952 = dma.vmem_to_hbm [thread:$0]  %s947, 256, %s7, [#allocation4], 128, 128, 8
    $region53: #{tpu_custom_call.1} parent=1 // pred_fallthru
      _
    // Predicated region
    $region54: #{tpu_custom_call.1} parent=1 // pred_check
      _
    $region55: #{tpu_custom_call.1} parent=1 // pred_check_branch
      %954 = sbr.rel (0) target = $region57
    $region56: #{tpu_custom_call.1} parent=1 // pred_region
      %955 = dma.done [#allocation4], 256
    $region57: #{tpu_custom_call.1} parent=1 // pred_fallthru
      _
    %956 = vsyncpa [#allocation3], 1
    %957 = vsyncpa [#allocation6], 1
    %958 = vsyncpa [#allocation9], 1
    %959 = vsyncpa [#allocation4], 1

</llo_original>
